<compile_context>
chip_gen: v7x
topology: tpu7x:2x2x1
jax: 0.10.0
libtpu: 0.0.40
codegen_flags: <defaults>
</compile_context>

<pallas_src>
import functools

import jax
import jax.numpy as jnp
from jax.experimental import pallas as pl
from jax.experimental.pallas import tpu as pltpu

_LANE = 128
_SUBLANE = 8


def _round_up(x, m):
    return -(-x // m) * m


def _pick_tile_rows():
    """Generation-aware default tile height (rows of 128 lanes)."""
    tile = 2048  # 1 MiB f32 per input per buffer: fine for v5e/v6e scoped VMEM.
    try:
        info = pltpu.get_tpu_info()
        ver = str(getattr(info, "chip_version", "")).lower()
        if "7" in ver:  # v7x: ~3.2 TB/s HBM -> bigger tiles amortize step cost.
            tile = 4096
    except Exception:
        pass
    return tile


def _masked_mse_kernel(pred_ref, targ_ref, sum_ref, cnt_ref, acc_sum, acc_cnt,
                       *, rows, tile_rows, steps_per_core, unroll):
    c = pl.program_id(0)   # TensorCore split ("parallel")
    i = pl.program_id(1)   # sequential steps within this core's row range

    # Zero this core's vreg-shaped accumulators on its first step.
    @pl.when(i == 0)
    def _():
        acc_sum[...] = jnp.zeros_like(acc_sum)
        acc_cnt[...] = jnp.zeros_like(acc_cnt)

    # First global row covered by this block.  The last block may be partial;
    # its out-of-range rows hold unspecified data and must be masked out.
    block_row0 = (c * steps_per_core + i) * tile_rows
    row_iota = jax.lax.broadcasted_iota(jnp.int32, (_SUBLANE, _LANE), 0)

    chunks = tile_rows // _SUBLANE

    def body(k, carry):
        r0 = pl.multiple_of(k * _SUBLANE, _SUBLANE)
        # Stream natively-typed (8, 128) chunks; upcast to f32 in-register.
        t = targ_ref[pl.ds(r0, _SUBLANE), :].astype(jnp.float32)
        p = pred_ref[pl.ds(r0, _SUBLANE), :].astype(jnp.float32)
        in_range = (block_row0 + r0 + row_iota) < rows
        mask = (t > 0.0) & in_range
        diff = jnp.where(mask, t - p, 0.0)
        acc_sum[...] += diff * diff
        acc_cnt[...] += mask.astype(jnp.int32)
        return carry

    jax.lax.fori_loop(0, chunks, body, 0, unroll=unroll)

    # One full cross-lane/sublane reduce per core, on its final step only.
    @pl.when(i == steps_per_core - 1)
    def _():
        sum_ref[...] = jnp.sum(acc_sum[...], keepdims=True)
        cnt_ref[...] = jnp.sum(acc_cnt[...].astype(jnp.float32), keepdims=True)


def masked_mse_loss(pred, target, *, tile_rows=None):
    assert pred.ndim == target.ndim, "inconsistent dimensions"
    assert pred.shape == target.shape, "inconsistent shapes"

    pred_f = pred.reshape(-1)
    targ_f = target.reshape(-1)
    n = pred_f.shape[0]

    rows = n // _LANE
    rem = n - rows * _LANE

    # Ragged (< 128 element) tail: tiny glue-JAX reduction instead of padding.
    if rem:
        tp = pred_f[rows * _LANE:].astype(jnp.float32)
        tt = targ_f[rows * _LANE:].astype(jnp.float32)
        tmask = tt > 0.0
        tdiff = jnp.where(tmask, tt - tp, 0.0)
        tail_sum = jnp.sum(tdiff * tdiff)
        tail_cnt = jnp.sum(tmask.astype(jnp.float32))
    else:
        tail_sum = jnp.float32(0.0)
        tail_cnt = jnp.float32(0.0)

    if rows == 0:
        # Degenerate (< 128 elements): nothing for the kernel to do.
        return tail_sum / tail_cnt

    if tile_rows is None:
        tile_rows = _pick_tile_rows()
    # Multiple of the sublane count, clamped to the (rounded-up) problem size.
    tile_rows = max(_SUBLANE, min(int(tile_rows), _round_up(rows, _SUBLANE)))
    tile_rows = _round_up(tile_rows, _SUBLANE)

    num_blocks = pl.cdiv(rows, tile_rows)
    # Leading "parallel" axis: shards work across TensorCores on multi-core
    # chips (v7x); on single-core chips it simply runs sequentially.  Only
    # enabled when the blocks split evenly so no grid step maps fully OOB.
    num_splits = 2 if (num_blocks >= 2 and num_blocks % 2 == 0) else 1
    steps_per_core = num_blocks // num_splits

    chunks = tile_rows // _SUBLANE
    unroll = 8 if chunks % 8 == 0 else (4 if chunks % 4 == 0 else
                                        (2 if chunks % 2 == 0 else 1))

    p2d = (pred_f[:rows * _LANE] if rem else pred_f).reshape(rows, _LANE)
    t2d = (targ_f[:rows * _LANE] if rem else targ_f).reshape(rows, _LANE)

    kernel = functools.partial(
        _masked_mse_kernel,
        rows=rows, tile_rows=tile_rows,
        steps_per_core=steps_per_core, unroll=unroll)

    sum_parts, cnt_parts = pl.pallas_call(
        kernel,
        out_shape=(
            jax.ShapeDtypeStruct((num_splits, 1, 1), jnp.float32),
            jax.ShapeDtypeStruct((num_splits, 1, 1), jnp.float32),
        ),
        grid_spec=pltpu.PrefetchScalarGridSpec(
            num_scalar_prefetch=0,
            grid=(num_splits, steps_per_core),
            in_specs=[
                pl.BlockSpec((tile_rows, _LANE),
                             lambda c, i: (c * steps_per_core + i, 0)),
                pl.BlockSpec((tile_rows, _LANE),
                             lambda c, i: (c * steps_per_core + i, 0)),
            ],
            out_specs=[
                pl.BlockSpec((None, 1, 1), lambda c, i: (c, 0, 0)),
                pl.BlockSpec((None, 1, 1), lambda c, i: (c, 0, 0)),
            ],
            scratch_shapes=[
                pltpu.VMEM((_SUBLANE, _LANE), jnp.float32),
                pltpu.VMEM((_SUBLANE, _LANE), jnp.int32),
            ],
        ),
        compiler_params=pltpu.CompilerParams(
            dimension_semantics=("parallel", "arbitrary")),
    )(p2d, t2d)

    total_sum = jnp.sum(sum_parts) + tail_sum
    total_cnt = jnp.sum(cnt_parts) + tail_cnt
    # 0 valid elements -> 0/0 -> NaN, matching torch's mean over an empty tensor.
    return total_sum / total_cnt


if __name__ == "__main__":
    key = jax.random.PRNGKey(0)
    kp, kt = jax.random.split(key)

    # NCHW: batch=2, channels=4, spatial=16x16
    pred = jax.random.normal(kp, (2, 4, 16, 16), dtype=jnp.float32)
    # target: mix of positive and non-positive values so the mask is non-trivial
    target = jax.random.normal(kt, (2, 4, 16, 16), dtype=jnp.float32)

    loss = masked_mse_loss(pred, target)
    jax.block_until_ready(loss)

    # Pure-JAX reference check
    mask = target > 0
    diff = jnp.where(mask, target - pred, 0.0)
    ref = jnp.sum(diff * diff) / jnp.sum(mask.astype(jnp.float32))
    assert jnp.allclose(loss, ref, rtol=1e-5, atol=1e-6), (loss, ref)

    print("KERNEL_OK")
</pallas_src>

<mosaic_0001>
module attributes {stable_mosaic.version = 11 : i64} {
  func.func @_masked_mse_kernel(%arg0: i32, %arg1: i32, %arg2: memref<16x128xf32, #tpu.memory_space<vmem>>, %arg3: memref<16x128xf32, #tpu.memory_space<vmem>>, %arg4: memref<1x1x1xf32, #tpu.memory_space<vmem>>, %arg5: memref<1x1x1xf32, #tpu.memory_space<vmem>>, %arg6: memref<8x128xf32, #tpu.memory_space<vmem>>, %arg7: memref<8x128xi32, #tpu.memory_space<vmem>>) attributes {dimension_semantics = [#tpu.dimension_semantics<parallel>, #tpu.dimension_semantics<arbitrary>], iteration_bounds = array<i64: 1, 1>, scalar_prefetch = 0 : i64, scratch_operands = 2 : i64, tpu.core_type = #tpu.core_type<tc>, window_params = [{transform_indices = @transform_0, window_bounds = array<i64: 16, 128>}, {transform_indices = @transform_1, window_bounds = array<i64: 16, 128>}, {transform_indices = @transform_2, window_bounds = array<i64: 1, 1, 1>}, {transform_indices = @transform_3, window_bounds = array<i64: 1, 1, 1>}]} {
    %c0_i32 = arith.constant 0 : i32
    %0 = arith.cmpi eq, %arg1, %c0_i32 : i32
    %1 = arith.extui %0 : i1 to i32
    %c0_i32_0 = arith.constant 0 : i32
    %2 = arith.cmpi ne, %1, %c0_i32_0 : i32
    scf.if %2 {
      %cst_30 = arith.constant 0.000000e+00 : f32
      %60 = vector.broadcast %cst_30 : f32 to vector<8x128xf32>
      %c0_31 = arith.constant 0 : index
      %c0_32 = arith.constant 0 : index
      %61 = vector.load %arg6[%c0_31, %c0_32] : memref<8x128xf32, #tpu.memory_space<vmem>>, vector<8x128xf32>
      tpu.vector_store %arg6[%c0_31, %c0_32], %60 {strides = array<i32>} : memref<8x128xf32, #tpu.memory_space<vmem>>, vector<8x128xf32>,
      %c0_i32_33 = arith.constant 0 : i32
      %62 = vector.broadcast %c0_i32_33 : i32 to vector<8x128xi32>
      %c0_34 = arith.constant 0 : index
      %c0_35 = arith.constant 0 : index
      %63 = vector.load %arg7[%c0_34, %c0_35] : memref<8x128xi32, #tpu.memory_space<vmem>>, vector<8x128xi32>
      tpu.vector_store %arg7[%c0_34, %c0_35], %62 {strides = array<i32>} : memref<8x128xi32, #tpu.memory_space<vmem>>, vector<8x128xi32>,
    } else {
    }
    %c1_i32 = arith.constant 1 : i32
    %3 = arith.muli %arg0, %c1_i32 : i32
    %4 = arith.addi %3, %arg1 : i32
    %c16_i32 = arith.constant 16 : i32
    %5 = arith.muli %4, %c16_i32 : i32
    %6 = tpu.iota {dimensions = array<i32: 0>} : vector<8x128xi32>
    %c0_i32_1 = arith.constant 0 : i32
    %c8_i32 = arith.constant 8 : i32
    %7 = arith.muli %c0_i32_1, %c8_i32 : i32
    %8 = tpu.assume_multiple %7, 8 : i32
    %9 = arith.index_cast %8 : i32 to index
    %c0 = arith.constant 0 : index
    %10 = vector.load %arg3[%9, %c0] : memref<16x128xf32, #tpu.memory_space<vmem>>, vector<8x128xf32>
    %11 = arith.index_cast %8 : i32 to index
    %c0_2 = arith.constant 0 : index
    %12 = vector.load %arg2[%11, %c0_2] : memref<16x128xf32, #tpu.memory_space<vmem>>, vector<8x128xf32>
    %13 = arith.addi %5, %8 : i32
    %14 = vector.broadcast %13 : i32 to vector<8x128xi32>
    %15 = arith.addi %14, %6 : vector<8x128xi32>
    %c16_i32_3 = arith.constant 16 : i32
    %16 = vector.broadcast %c16_i32_3 : i32 to vector<8x128xi32>
    %17 = arith.cmpi slt, %15, %16 : vector<8x128xi32>
    %cst = arith.constant 0.000000e+00 : f32
    %18 = vector.broadcast %cst : f32 to vector<8x128xf32>
    %19 = arith.cmpf ogt, %10, %18 : vector<8x128xf32>
    %20 = arith.andi %19, %17 : vector<8x128xi1>
    %21 = arith.subf %10, %12 : vector<8x128xf32>
    %cst_4 = arith.constant 0.000000e+00 : f32
    %22 = vector.broadcast %cst_4 : f32 to vector<8x128xf32>
    %23 = arith.select %20, %21, %22 : vector<8x128xi1>, vector<8x128xf32>
    %c0_5 = arith.constant 0 : index
    %c0_6 = arith.constant 0 : index
    %24 = vector.load %arg6[%c0_5, %c0_6] : memref<8x128xf32, #tpu.memory_space<vmem>>, vector<8x128xf32>
    %25 = arith.mulf %23, %23 : vector<8x128xf32>
    %26 = arith.addf %24, %25 : vector<8x128xf32>
    %c0_7 = arith.constant 0 : index
    %c0_8 = arith.constant 0 : index
    %27 = vector.load %arg6[%c0_7, %c0_8] : memref<8x128xf32, #tpu.memory_space<vmem>>, vector<8x128xf32>
    tpu.vector_store %arg6[%c0_7, %c0_8], %26 {strides = array<i32>} : memref<8x128xf32, #tpu.memory_space<vmem>>, vector<8x128xf32>,
    %c0_9 = arith.constant 0 : index
    %c0_10 = arith.constant 0 : index
    %28 = vector.load %arg7[%c0_9, %c0_10] : memref<8x128xi32, #tpu.memory_space<vmem>>, vector<8x128xi32>
    %29 = arith.extui %20 : vector<8x128xi1> to vector<8x128xi32>
    %30 = arith.addi %28, %29 : vector<8x128xi32>
    %c0_11 = arith.constant 0 : index
    %c0_12 = arith.constant 0 : index
    %31 = vector.load %arg7[%c0_11, %c0_12] : memref<8x128xi32, #tpu.memory_space<vmem>>, vector<8x128xi32>
    tpu.vector_store %arg7[%c0_11, %c0_12], %30 {strides = array<i32>} : memref<8x128xi32, #tpu.memory_space<vmem>>, vector<8x128xi32>,
    %c1_i32_13 = arith.constant 1 : i32
    %c8_i32_14 = arith.constant 8 : i32
    %32 = arith.muli %c1_i32_13, %c8_i32_14 : i32
    %33 = tpu.assume_multiple %32, 8 : i32
    %34 = arith.index_cast %33 : i32 to index
    %c0_15 = arith.constant 0 : index
    %35 = vector.load %arg3[%34, %c0_15] : memref<16x128xf32, #tpu.memory_space<vmem>>, vector<8x128xf32>
    %36 = arith.index_cast %33 : i32 to index
    %c0_16 = arith.constant 0 : index
    %37 = vector.load %arg2[%36, %c0_16] : memref<16x128xf32, #tpu.memory_space<vmem>>, vector<8x128xf32>
    %38 = arith.addi %5, %33 : i32
    %39 = vector.broadcast %38 : i32 to vector<8x128xi32>
    %40 = arith.addi %39, %6 : vector<8x128xi32>
    %c16_i32_17 = arith.constant 16 : i32
    %41 = vector.broadcast %c16_i32_17 : i32 to vector<8x128xi32>
    %42 = arith.cmpi slt, %40, %41 : vector<8x128xi32>
    %cst_18 = arith.constant 0.000000e+00 : f32
    %43 = vector.broadcast %cst_18 : f32 to vector<8x128xf32>
    %44 = arith.cmpf ogt, %35, %43 : vector<8x128xf32>
    %45 = arith.andi %44, %42 : vector<8x128xi1>
    %46 = arith.subf %35, %37 : vector<8x128xf32>
    %cst_19 = arith.constant 0.000000e+00 : f32
    %47 = vector.broadcast %cst_19 : f32 to vector<8x128xf32>
    %48 = arith.select %45, %46, %47 : vector<8x128xi1>, vector<8x128xf32>
    %c0_20 = arith.constant 0 : index
    %c0_21 = arith.constant 0 : index
    %49 = vector.load %arg6[%c0_20, %c0_21] : memref<8x128xf32, #tpu.memory_space<vmem>>, vector<8x128xf32>
    %50 = arith.mulf %48, %48 : vector<8x128xf32>
    %51 = arith.addf %49, %50 : vector<8x128xf32>
    %c0_22 = arith.constant 0 : index
    %c0_23 = arith.constant 0 : index
    %52 = vector.load %arg6[%c0_22, %c0_23] : memref<8x128xf32, #tpu.memory_space<vmem>>, vector<8x128xf32>
    tpu.vector_store %arg6[%c0_22, %c0_23], %51 {strides = array<i32>} : memref<8x128xf32, #tpu.memory_space<vmem>>, vector<8x128xf32>,
    %c0_24 = arith.constant 0 : index
    %c0_25 = arith.constant 0 : index
    %53 = vector.load %arg7[%c0_24, %c0_25] : memref<8x128xi32, #tpu.memory_space<vmem>>, vector<8x128xi32>
    %54 = arith.extui %45 : vector<8x128xi1> to vector<8x128xi32>
    %55 = arith.addi %53, %54 : vector<8x128xi32>
    %c0_26 = arith.constant 0 : index
    %c0_27 = arith.constant 0 : index
    %56 = vector.load %arg7[%c0_26, %c0_27] : memref<8x128xi32, #tpu.memory_space<vmem>>, vector<8x128xi32>
    tpu.vector_store %arg7[%c0_26, %c0_27], %55 {strides = array<i32>} : memref<8x128xi32, #tpu.memory_space<vmem>>, vector<8x128xi32>,
    %c2_i32 = arith.constant 2 : i32
    %c0_i32_28 = arith.constant 0 : i32
    %57 = arith.cmpi eq, %arg1, %c0_i32_28 : i32
    %58 = arith.extui %57 : i1 to i32
    %c0_i32_29 = arith.constant 0 : i32
    %59 = arith.cmpi ne, %58, %c0_i32_29 : i32
    scf.if %59 {
      %c0_30 = arith.constant 0 : index
      %c0_31 = arith.constant 0 : index
      %60 = vector.load %arg6[%c0_30, %c0_31] : memref<8x128xf32, #tpu.memory_space<vmem>>, vector<8x128xf32>
      %61 = vector.shape_cast %60 : vector<8x128xf32> to vector<1x8x128xf32>
      %cst_32 = arith.constant dense<0.000000e+00> : vector<1xf32>
      %62 = vector.multi_reduction <add>, %61, %cst_32 [1, 2] : vector<1x8x128xf32> to vector<1xf32>
      %63 = vector.shape_cast %62 : vector<1xf32> to vector<1x1x1xf32>
      %64 = vector.extract %63[0, 0, 0] : f32 from vector<1x1x1xf32>
      %65 = vector.broadcast %64 : f32 to vector<1x1xf32>
      %c0_33 = arith.constant 0 : index
      %c0_34 = arith.constant 0 : index
      %c0_35 = arith.constant 0 : index
      %66 = vector.load %arg4[%c0_33, %c0_34, %c0_35] : memref<1x1x1xf32, #tpu.memory_space<vmem>>, vector<1x1x1xf32>
      %67 = vector.shape_cast %66 : vector<1x1x1xf32> to vector<1x1xf32>
      %68 = vector.shape_cast %65 : vector<1x1xf32> to vector<1x1x1xf32>
      tpu.vector_store %arg4[%c0_33, %c0_34, %c0_35], %68 {strides = array<i32>} : memref<1x1x1xf32, #tpu.memory_space<vmem>>, vector<1x1x1xf32>,
      %c0_36 = arith.constant 0 : index
      %c0_37 = arith.constant 0 : index
      %69 = vector.load %arg7[%c0_36, %c0_37] : memref<8x128xi32, #tpu.memory_space<vmem>>, vector<8x128xi32>
      %70 = arith.sitofp %69 : vector<8x128xi32> to vector<8x128xf32>
      %71 = vector.shape_cast %70 : vector<8x128xf32> to vector<1x8x128xf32>
      %cst_38 = arith.constant dense<0.000000e+00> : vector<1xf32>
      %72 = vector.multi_reduction <add>, %71, %cst_38 [1, 2] : vector<1x8x128xf32> to vector<1xf32>
      %73 = vector.shape_cast %72 : vector<1xf32> to vector<1x1x1xf32>
      %74 = vector.extract %73[0, 0, 0] : f32 from vector<1x1x1xf32>
      %75 = vector.broadcast %74 : f32 to vector<1x1xf32>
      %c0_39 = arith.constant 0 : index
      %c0_40 = arith.constant 0 : index
      %c0_41 = arith.constant 0 : index
      %76 = vector.load %arg5[%c0_39, %c0_40, %c0_41] : memref<1x1x1xf32, #tpu.memory_space<vmem>>, vector<1x1x1xf32>
      %77 = vector.shape_cast %76 : vector<1x1x1xf32> to vector<1x1xf32>
      %78 = vector.shape_cast %75 : vector<1x1xf32> to vector<1x1x1xf32>
      tpu.vector_store %arg5[%c0_39, %c0_40, %c0_41], %78 {strides = array<i32>} : memref<1x1x1xf32, #tpu.memory_space<vmem>>, vector<1x1x1xf32>,
    } else {
    }
    return
  }
  func.func @transform_0(%arg0: i32, %arg1: i32) -> (i32, i32) {
    %c1_i32 = arith.constant 1 : i32
    %0 = arith.muli %arg0, %c1_i32 : i32
    %1 = arith.addi %0, %arg1 : i32
    %c0_i32 = arith.constant 0 : i32
    %c0_i32_0 = arith.constant 0 : i32
    return %1, %c0_i32 : i32, i32
  }
  func.func @transform_1(%arg0: i32, %arg1: i32) -> (i32, i32) {
    %c1_i32 = arith.constant 1 : i32
    %0 = arith.muli %arg0, %c1_i32 : i32
    %1 = arith.addi %0, %arg1 : i32
    %c0_i32 = arith.constant 0 : i32
    %c0_i32_0 = arith.constant 0 : i32
    return %1, %c0_i32 : i32, i32
  }
  func.func @transform_2(%arg0: i32, %arg1: i32) -> (i32, i32, i32) {
    %c0_i32 = arith.constant 0 : i32
    %c0_i32_0 = arith.constant 0 : i32
    %c0_i32_1 = arith.constant 0 : i32
    return %arg0, %c0_i32, %c0_i32_0 : i32, i32, i32
  }
  func.func @transform_3(%arg0: i32, %arg1: i32) -> (i32, i32, i32) {
    %c0_i32 = arith.constant 0 : i32
    %c0_i32_0 = arith.constant 0 : i32
    %c0_i32_1 = arith.constant 0 : i32
    return %arg0, %c0_i32, %c0_i32_0 : i32, i32, i32
  }
}

</mosaic_0001>

<llo_original>
// kernel: tpu_custom_call.1
$region0: #{tpu_custom_call.1}
  #allocation0 [shape = 'u32[]', space=smem, size = 0x4, offset = 0x4, fixed_abs, tag = 'smem constant byte address 0x4 - core index']
  #allocation1 [shape = 'u32[144,128]{1,0:T(1,128)}', space=vmem, size = 0x12000, scoped, tag = 'internal scratch']
  #allocation2 [shape = 'f32[8,128]{1,0:T(8,128)}', space=vmem, size = 0x1000, scoped, tag = 'scratch operand']
  #allocation3 [shape = 's32[8,128]{1,0:T(8,128)}', space=vmem, size = 0x1000, scoped, tag = 'scratch operand']
  %s0 = inlined_call_operand.hbm [shape: f32[16,128], index: 0, kind: input, shape index: {}]
  %s1 = inlined_call_operand.hbm [shape: f32[16,128], index: 1, kind: input, shape index: {}]
  %s2 = inlined_call_operand.hbm [shape: f32[1,1,1], index: 2, kind: output, shape index: {0}]
  %s3 = inlined_call_operand.hbm [shape: f32[1,1,1], index: 3, kind: output, shape index: {1}]
  %4 = xla_tuple %s2, %s3
  %s5 = sld [smem:[#allocation0]]
  $region42: #{tpu_custom_call.1} parent=0
    _
  %s7 = ssub.s32 1, %s5
  %s8 = scalar_select 0, %s7, %s5
  $region1: #{tpu_custom_call.1} parent=0
    #allocation4 [shape = 'u8[8192]{0}', space=vmem, size = 0x2000, scoped, tag = 'input window, operand 0, single buffered']
    #allocation5 [shape = 's32[1]{0}', space=sflag, size = 0x4, scoped, tag = 'scoped memory for tpu_custom_call.1']
    #allocation6 [shape = 's32[1]{0}', space=sflag, size = 0x4, scoped, tag = 'scoped memory for tpu_custom_call.1']
    #allocation7 [shape = 'u8[8192]{0}', space=vmem, size = 0x2000, scoped, tag = 'input window, operand 1, single buffered']
    #allocation8 [shape = 's32[1]{0}', space=sflag, size = 0x4, scoped, tag = 'scoped memory for tpu_custom_call.1']
    #allocation9 [shape = 'u8[512]{0}', space=vmem, size = 0x400, scoped, tag = 'output window, operand 0, single buffered']
    #allocation10 [shape = 'u8[512]{0}', space=vmem, size = 0x400, scoped, tag = 'output window, operand 1, single buffered']
    #allocation11 [shape = 's32[1]{0}', space=sflag, size = 0x4, scoped, tag = 'scoped memory for tpu_custom_call.1']
    %9 = vsyncpa [#allocation5], 0
    %10 = vsyncpa [#allocation8], 0
    %11 = vsyncpa [#allocation6], 0
    %12 = vsyncpa [#allocation11], 0
    // Predicated region
    $region2: #{tpu_custom_call.1} parent=1 // pred_check
      _
    $region3: #{tpu_custom_call.1} parent=1 // pred_check_branch
      %14 = sbr.rel (0) target = $region5
    $region4: #{tpu_custom_call.1} parent=1 // pred_region
      %s15 = sadd.s32 0, 0
      %s16 = smul.u32 2, %s15
      %s18 = ssub.s32 256, 256
      %19 = vsyncadd [#allocation5], %s18
      %s20 = smul.addr %s16, 128
      %s21 = scalar_lea.hbm %s0, %s20
      %s22 = sshll.u32 [#allocation4], 4
      %s23 = int_to_ptr.vmem [resolvable:$true] %s22
      %28 = dma.hbm_to_vmem [thread:$0]  %s21, 256, %s23, [#allocation5], 128, 128, 8
    $region5: #{tpu_custom_call.1} parent=1 // pred_fallthru
      _
    // Predicated region
    $region6: #{tpu_custom_call.1} parent=1 // pred_check
      _
    $region7: #{tpu_custom_call.1} parent=1 // pred_check_branch
      %30 = sbr.rel (0) target = $region9
    $region8: #{tpu_custom_call.1} parent=1 // pred_region
      %s31 = sadd.s32 0, 0
      %s32 = smul.u32 2, %s31
      %s34 = ssub.s32 256, 256
      %35 = vsyncadd [#allocation8], %s34
      %s36 = smul.addr %s32, 128
      %s37 = scalar_lea.hbm %s1, %s36
      %s38 = sshll.u32 [#allocation7], 4
      %s39 = int_to_ptr.vmem [resolvable:$true] %s38
      %44 = dma.hbm_to_vmem [thread:$0]  %s37, 256, %s39, [#allocation8], 128, 128, 8
    $region9: #{tpu_custom_call.1} parent=1 // pred_fallthru
      _
    // Predicated region
    $region10: #{tpu_custom_call.1} parent=1 // pred_check
      _
    $region11: #{tpu_custom_call.1} parent=1 // pred_check_branch
      %46 = sbr.rel (0) target = $region13
    $region12: #{tpu_custom_call.1} parent=1 // pred_region
      %47 = dma.done [#allocation5], 256
    $region13: #{tpu_custom_call.1} parent=1 // pred_fallthru
      _
    // Predicated region
    $region14: #{tpu_custom_call.1} parent=1 // pred_check
      _
    $region15: #{tpu_custom_call.1} parent=1 // pred_check_branch
      %49 = sbr.rel (0) target = $region17
    $region16: #{tpu_custom_call.1} parent=1 // pred_region
      %50 = dma.done [#allocation8], 256
    $region17: #{tpu_custom_call.1} parent=1 // pred_fallthru
      _
    %s51 = sadd.s32 0, 0
    %s52 = smul.u32 2, %s51
    %s53 = sadd.s32 0, 0
    %s54 = smul.u32 2, %s53
    %p55 = scmp.eq.s32.totalorder 0, 0
    // Predicated region
    $region18: #{tpu_custom_call.1} parent=1 // pred_check
      %p56 = pneg %p55
    $region19: #{tpu_custom_call.1} parent=1 // pred_check_branch
      %58 = sbr.rel (%p56) target = $region21
    $region20: #{tpu_custom_call.1} parent=1 // pred_region
      %59 = vst [vmem:[#allocation2] sm:$0xff] 0.0
      %60 = vst [vmem:[#allocation3] sm:$0xff] 0
    $region21: #{tpu_custom_call.1} parent=1 // pred_fallthru
      _
    %s61 = sadd.s32 0, 0
    %s62 = smul.u32 %s61, 16
    %v63 = vlaneseq
    %v64 = vshrl.u32 %v63, 7
    %v65 = vld [vmem:[#allocation7] sm:$0xff]
    %v66 = vld [vmem:[#allocation4] sm:$0xff]
    %s67 = sadd.s32 %s62, 0
    %v68 = vstv %s67
    %v69 = vadd.s32 %v68, %v64
    %vm70 = vcmp.lt.s32.totalorder %v69, 16
    %vm71 = vcmp.gt.f32.partialorder %v65, 0.0
    %vm72 = vmand %vm71, %vm70
    %v73 = vsub.f32 %v65, %v66
    %v74 = vsel %vm72, %v73, 0.0
    %v75 = vld [vmem:[#allocation2] sm:$0xff]
    %v76 = vmul.f32 %v74, %v74
    %v77 = vadd.f32 %v75, %v76
    %78 = vst [vmem:[#allocation2] sm:$0xff] %v77
    %v79 = vld [vmem:[#allocation3] sm:$0xff]
    %v80 = vsel %vm72, 1, 0
    %v81 = vadd.s32 %v79, %v80
    %82 = vst [vmem:[#allocation3] sm:$0xff] %v81
    %s83 = scalar_lea.vmem [#allocation7], 8
    %v84 = vld [vmem:[%s83] sm:$0xff]
    %s85 = scalar_lea.vmem [#allocation4], 8
    %v86 = vld [vmem:[%s85] sm:$0xff]
    %s87 = sadd.s32 %s62, 8
    %v88 = vstv %s87
    %v89 = vadd.s32 %v88, %v64
    %vm90 = vcmp.lt.s32.totalorder %v89, 16
    %vm91 = vcmp.gt.f32.partialorder %v84, 0.0
    %vm92 = vmand %vm91, %vm90
    %v93 = vsub.f32 %v84, %v86
    %v94 = vsel %vm92, %v93, 0.0
    %v95 = vld [vmem:[#allocation2] sm:$0xff]
    %v96 = vmul.f32 %v94, %v94
    %v97 = vadd.f32 %v95, %v96
    %98 = vst [vmem:[#allocation2] sm:$0xff] %v97
    %v99 = vld [vmem:[#allocation3] sm:$0xff]
    %v100 = vsel %vm92, 1, 0
    %v101 = vadd.s32 %v99, %v100
    %102 = vst [vmem:[#allocation3] sm:$0xff] %v101
    // Predicated region
    $region22: #{tpu_custom_call.1} parent=1 // pred_check
      %p103 = pneg %p55
    $region23: #{tpu_custom_call.1} parent=1 // pred_check_branch
      %105 = sbr.rel (%p103) target = $region25
    $region24: #{tpu_custom_call.1} parent=1 // pred_region
      %v106 = vld [vmem:[#allocation2] sm:$0xff]
      %107 = vadd.xlane.f32.xlu0 %v106
      %v108 = vpop.xlane.xlu0 %107
      %v109 = vrot.slane %v108, 4
      %v110 = vadd.f32 %v108, %v109
      %v111 = vrot.slane %v110, 2
      %v112 = vadd.f32 %v110, %v111
      %v113 = vrot.slane %v112, 1
      %v114 = vadd.f32 %v112, %v113
      %s115 = vtos %v114
      %v116 = vstv %s115
      %vm117 = vcmask 0
      %118 = vst.msk [vmem:[#allocation9] sm:$0x1] %vm117, %v116
      %v119 = vld [vmem:[#allocation3] sm:$0xff]
      %v120 = vcvt.s32.f32 %v119
      %121 = vadd.xlane.f32.xlu0 %v120
      %v122 = vpop.xlane.xlu0 %121
      %v123 = vrot.slane %v122, 4
      %v124 = vadd.f32 %v122, %v123
      %v125 = vrot.slane %v124, 2
      %v126 = vadd.f32 %v124, %v125
      %v127 = vrot.slane %v126, 1
      %v128 = vadd.f32 %v126, %v127
      %s129 = vtos %v128
      %v130 = vstv %s129
      %131 = vst.msk [vmem:[#allocation10] sm:$0x1] %vm117, %v130
    $region25: #{tpu_custom_call.1} parent=1 // pred_fallthru
      _
    // Predicated region
    $region26: #{tpu_custom_call.1} parent=1 // pred_check
      _
    $region27: #{tpu_custom_call.1} parent=1 // pred_check_branch
      %133 = sbr.rel (0) target = $region29
    $region28: #{tpu_custom_call.1} parent=1 // pred_region
      %s135 = ssub.s32 16, 16
      %136 = vsyncadd [#allocation6], %s135
      %s138 = sshll.u32 [#allocation9], 4
      %s139 = int_to_ptr.vmem [resolvable:$true] %s138
      %141 = dma.vmem_to_hbm [thread:$0]  %s139, 16, %s2, [#allocation6]
    $region29: #{tpu_custom_call.1} parent=1 // pred_fallthru
      _
    // Predicated region
    $region30: #{tpu_custom_call.1} parent=1 // pred_check
      _
    $region31: #{tpu_custom_call.1} parent=1 // pred_check_branch
      %143 = sbr.rel (0) target = $region33
    $region32: #{tpu_custom_call.1} parent=1 // pred_region
      %s145 = ssub.s32 16, 16
      %146 = vsyncadd [#allocation11], %s145
      %s148 = sshll.u32 [#allocation10], 4
      %s149 = int_to_ptr.vmem [resolvable:$true] %s148
      %151 = dma.vmem_to_hbm [thread:$0]  %s149, 16, %s3, [#allocation11]
    $region33: #{tpu_custom_call.1} parent=1 // pred_fallthru
      _
    // Predicated region
    $region34: #{tpu_custom_call.1} parent=1 // pred_check
      _
    $region35: #{tpu_custom_call.1} parent=1 // pred_check_branch
      %153 = sbr.rel (0) target = $region37
    $region36: #{tpu_custom_call.1} parent=1 // pred_region
      %154 = dma.done [#allocation6], 16
    $region37: #{tpu_custom_call.1} parent=1 // pred_fallthru
      _
    // Predicated region
    $region38: #{tpu_custom_call.1} parent=1 // pred_check
      _
    $region39: #{tpu_custom_call.1} parent=1 // pred_check_branch
      %156 = sbr.rel (0) target = $region41
    $region40: #{tpu_custom_call.1} parent=1 // pred_region
      %157 = dma.done [#allocation11], 16
    $region41: #{tpu_custom_call.1} parent=1 // pred_fallthru
      _
    %158 = vsyncpa [#allocation5], 1
    %159 = vsyncpa [#allocation8], 1
    %160 = vsyncpa [#allocation6], 1
    %161 = vsyncpa [#allocation11], 1

</llo_original>
